<compile_context>
chip_gen: v7x
topology: tpu7x:2x2x1
jax: 0.10.0
libtpu: 0.0.40
codegen_flags: <defaults>
</compile_context>

<pallas_src>
import jax
import jax.numpy as jnp
from jax.experimental import pallas as pl
from jax.experimental.pallas import tpu as pltpu


_VMEM_LIMIT_BYTES = 32 * 1024 * 1024          # raise v5e's 16 MiB default; fits v6e/v7x
_INPUT_TILE_BUDGET_BYTES = 16 * 1024 * 1024   # 2 inputs x 2 pipeline buffers x tile bytes
_PER_TILE_BUDGET_BYTES = _INPUT_TILE_BUDGET_BYTES // 4  # bytes for ONE input tile


def _round_up(x: int, m: int) -> int:
    return ((x + m - 1) // m) * m


def _l2_cost_kernel(x_ref, xp_ref, o_ref, acc_ref):
    # Grid: (batch tiles [parallel], feature tiles [arbitrary / reduction]).
    k = pl.program_id(1)

    @pl.when(k == 0)
    def _init():
        acc_ref[...] = jnp.zeros_like(acc_ref)

    # Elementwise diff + square on the VPU (f32 accumulate regardless of input
    # dtype), lane reduction on the XLU, sqrt on the EUP. HBM/DMA is the
    # binding resource, so no MXU tricks here.
    diff = xp_ref[...].astype(jnp.float32) - x_ref[...].astype(jnp.float32)
    acc_ref[...] += jnp.sum(diff * diff, axis=-1, keepdims=True)

    @pl.when(k == pl.num_programs(1) - 1)
    def _finish():
        o_ref[...] = jnp.sqrt(acc_ref[...]).astype(o_ref.dtype)


def _choose_tiles(B: int, D: int, itemsize: int):
    """Pick (tile_b, tile_d, padded_D) under the VMEM tile budget."""
    # Feature tiling: prefer a single full-width feature tile (no padding, no
    # cross-step accumulation) whenever a >=256-row batch tile still fits.
    if D * itemsize * 256 <= _PER_TILE_BUDGET_BYTES:
        tile_d = D
        padded_D = D
    else:
        padded_D = _round_up(D, 128)          # lane alignment; at most +127 cols
        tile_d = 128
        for cand in (512, 384, 256, 128):     # biggest lane-aligned divisor <= 512
            if padded_D % cand == 0:
                tile_d = cand
                break
    # Batch tile: biggest multiple of 8 whose double-buffered input pair fits
    # the budget, capped at 1024 rows.
    cap_b = _PER_TILE_BUDGET_BYTES // max(1, tile_d * itemsize)
    tile_b = max(8, min(1024, (cap_b // 8) * 8))
    # Keep >= 2 batch grid steps when the batch allows it (v7x megacore).
    tile_b = min(tile_b, max(8, _round_up(pl.cdiv(B, 2), 8)))
    # Tiny batches: one full-extent block (allowed even when B % 8 != 0).
    if B <= tile_b:
        tile_b = B
    return tile_b, tile_d, padded_D


def l2_cost(x: jax.Array, x_prime: jax.Array, _force_tiles=None) -> jax.Array:
    """Per-sample L2 cost ||x_prime - x||_2 reduced over the last axis.

    x, x_prime: float arrays of identical shape (..., D). Returns float32 of
    shape x.shape[:-1] (scalar for 1-D input). bf16 inputs are supported and
    accumulated in f32 inside the kernel.
    """
    assert x.shape == x_prime.shape, "x and x_prime must have the same shape"
    assert x.ndim >= 1
    assert jnp.issubdtype(x.dtype, jnp.floating)
    orig_shape = x.shape
    D = orig_shape[-1]
    x2 = x.reshape(-1, D)
    xp2 = x_prime.reshape(-1, D)
    B = x2.shape[0]

    itemsize = jnp.dtype(x2.dtype).itemsize
    if _force_tiles is None:
        tile_b, tile_d, padded_D = _choose_tiles(B, D, itemsize)
    else:  # testing hook to exercise the multi-step reduction path
        tile_b, tile_d = _force_tiles
        padded_D = _round_up(D, tile_d)

    if padded_D != D:
        # Zero feature padding contributes 0 to the sum of squares -> exact.
        pad = ((0, 0), (0, padded_D - D))
        x2 = jnp.pad(x2, pad)
        xp2 = jnp.pad(xp2, pad)

    # Batch axis uses cdiv partial blocks (no HBM pad copy); out-of-range rows
    # only produce garbage in output rows that Pallas masks / we never return.
    grid = (pl.cdiv(B, tile_b), padded_D // tile_d)  # reduction axis last

    in_spec = pl.BlockSpec((tile_b, tile_d), lambda i, k: (i, k))
    out_spec = pl.BlockSpec((tile_b, 1), lambda i, k: (i, 0))

    out = pl.pallas_call(
        _l2_cost_kernel,
        out_shape=jax.ShapeDtypeStruct((B, 1), jnp.float32),
        grid_spec=pltpu.PrefetchScalarGridSpec(
            num_scalar_prefetch=0,
            grid=grid,
            in_specs=[in_spec, in_spec],
            out_specs=out_spec,
            scratch_shapes=[pltpu.VMEM((tile_b, 1), jnp.float32)],
        ),
        compiler_params=pltpu.CompilerParams(
            dimension_semantics=("parallel", "arbitrary"),
            vmem_limit_bytes=_VMEM_LIMIT_BYTES,
        ),
    )(x2, xp2)

    cost = out[:, 0]
    if len(orig_shape) == 1:
        return cost[0]
    return cost.reshape(orig_shape[:-1])


class CostFunctionL2:
    """JAX/Pallas analogue of strategic_ml._CostFunction (L2 concrete cost)."""

    def __init__(self, dim=-1):
        self.dim = dim

    def get_dim(self):
        return self.dim

    def set_dim(self, dim):
        self.dim = dim

    def __call__(self, x, x_prime):
        # TODO(synk): dim=None / tuple / non-last axis reductions are not
        # implemented in the Pallas kernel; only the per-sample (last-axis)
        # cost is supported.
        assert self.dim in (-1, x.ndim - 1), \
            "only last-axis reduction implemented in the Pallas kernel"
        return l2_cost(x, x_prime)


if __name__ == "__main__":
    key = jax.random.PRNGKey(0)
    k1, k2, k3, k4, k5, k6, k7, k8 = jax.random.split(key, 8)

    cost_fn = CostFunctionL2(dim=-1)

    # Case 1: 2-D input, batch/feature NOT (8,128)-aligned; single full-extent
    # block path, no padding (batch=6, features=160).
    B, D = 6, 160
    x = jax.random.normal(k1, (B, D), dtype=jnp.float32)
    x_prime = jax.random.normal(k2, (B, D), dtype=jnp.float32)
    cost = jax.block_until_ready(cost_fn(x, x_prime))
    ref = jnp.linalg.norm(x_prime - x, axis=-1)
    assert cost.shape == (B,)
    assert jnp.allclose(cost, ref, atol=1e-5, rtol=1e-5), (cost, ref)

    # Case 2: 3-D bf16 input (batch=2, seq=3, hidden=96); leading dims are
    # flattened, inputs stay bf16 in HBM, accumulation in f32 in-kernel.
    xb = jax.random.normal(k3, (2, 3, 96), dtype=jnp.bfloat16)
    xpb = jax.random.normal(k4, (2, 3, 96), dtype=jnp.bfloat16)
    cost_b = jax.block_until_ready(cost_fn(xb, xpb))
    ref_b = jnp.linalg.norm(
        xpb.astype(jnp.float32) - xb.astype(jnp.float32), axis=-1)
    assert cost_b.shape == (2, 3)
    assert jnp.allclose(cost_b, ref_b, atol=1e-2, rtol=1e-2), (cost_b, ref_b)

    # Case 3: ragged batch (20 rows, tile_b=16) -> exercises the partial
    # last batch block (masked writes, no HBM pad copy).
    xc = jax.random.normal(k5, (20, 32), dtype=jnp.float32)
    xpc = jax.random.normal(k6, (20, 32), dtype=jnp.float32)
    cost_c = jax.block_until_ready(cost_fn(xc, xpc))
    ref_c = jnp.linalg.norm(xpc - xc, axis=-1)
    assert cost_c.shape == (20,)
    assert jnp.allclose(cost_c, ref_c, atol=1e-5, rtol=1e-5), (cost_c, ref_c)

    # Case 4: forced small tiles -> exercises the multi-step feature reduction
    # (VMEM accumulator across the "arbitrary" grid axis) plus zero-padding of
    # the feature dim (200 -> 256).
    xd = jax.random.normal(k7, (16, 200), dtype=jnp.float32)
    xpd = jax.random.normal(k8, (16, 200), dtype=jnp.float32)
    cost_d = jax.block_until_ready(l2_cost(xd, xpd, _force_tiles=(8, 128)))
    ref_d = jnp.linalg.norm(xpd - xd, axis=-1)
    assert cost_d.shape == (16,)
    assert jnp.allclose(cost_d, ref_d, atol=1e-5, rtol=1e-5), (cost_d, ref_d)

    print("KERNEL_OK")
</pallas_src>

<mosaic_0001>
module attributes {stable_mosaic.version = 11 : i64} {
  func.func @_l2_cost_kernel(%arg0: i32, %arg1: i32, %arg2: memref<6x160xf32, #tpu.memory_space<vmem>>, %arg3: memref<6x160xf32, #tpu.memory_space<vmem>>, %arg4: memref<6x1xf32, #tpu.memory_space<vmem>>, %arg5: memref<6x1xf32, #tpu.memory_space<vmem>>) attributes {dimension_semantics = [#tpu.dimension_semantics<parallel>, #tpu.dimension_semantics<arbitrary>], iteration_bounds = array<i64: 1, 1>, scalar_prefetch = 0 : i64, scratch_operands = 1 : i64, tpu.core_type = #tpu.core_type<tc>, window_params = [{transform_indices = @transform_0, window_bounds = array<i64: 6, 160>}, {transform_indices = @transform_1, window_bounds = array<i64: 6, 160>}, {transform_indices = @transform_2, window_bounds = array<i64: 6, 1>}]} {
    %c0_i32 = arith.constant 0 : i32
    %0 = arith.cmpi eq, %arg1, %c0_i32 : i32
    %1 = arith.extui %0 : i1 to i32
    %c0_i32_0 = arith.constant 0 : i32
    %2 = arith.cmpi ne, %1, %c0_i32_0 : i32
    scf.if %2 {
      %cst_10 = arith.constant 0.000000e+00 : f32
      %15 = vector.broadcast %cst_10 : f32 to vector<6x1xf32>
      %c0_11 = arith.constant 0 : index
      %c0_12 = arith.constant 0 : index
      %16 = vector.load %arg5[%c0_11, %c0_12] : memref<6x1xf32, #tpu.memory_space<vmem>>, vector<6x1xf32>
      tpu.vector_store %arg5[%c0_11, %c0_12], %15 {strides = array<i32>} : memref<6x1xf32, #tpu.memory_space<vmem>>, vector<6x1xf32>,
    } else {
    }
    %c0 = arith.constant 0 : index
    %c0_1 = arith.constant 0 : index
    %3 = vector.load %arg3[%c0, %c0_1] : memref<6x160xf32, #tpu.memory_space<vmem>>, vector<6x160xf32>
    %c0_2 = arith.constant 0 : index
    %c0_3 = arith.constant 0 : index
    %4 = vector.load %arg2[%c0_2, %c0_3] : memref<6x160xf32, #tpu.memory_space<vmem>>, vector<6x160xf32>
    %5 = arith.subf %3, %4 : vector<6x160xf32>
    %c0_4 = arith.constant 0 : index
    %c0_5 = arith.constant 0 : index
    %6 = vector.load %arg5[%c0_4, %c0_5] : memref<6x1xf32, #tpu.memory_space<vmem>>, vector<6x1xf32>
    %7 = arith.mulf %5, %5 : vector<6x160xf32>
    %cst = arith.constant dense<0.000000e+00> : vector<6xf32>
    %8 = vector.multi_reduction <add>, %7, %cst [1] : vector<6x160xf32> to vector<6xf32>
    %9 = vector.shape_cast %8 : vector<6xf32> to vector<6x1xf32>
    %10 = arith.addf %6, %9 : vector<6x1xf32>
    %c0_6 = arith.constant 0 : index
    %c0_7 = arith.constant 0 : index
    %11 = vector.load %arg5[%c0_6, %c0_7] : memref<6x1xf32, #tpu.memory_space<vmem>>, vector<6x1xf32>
    tpu.vector_store %arg5[%c0_6, %c0_7], %10 {strides = array<i32>} : memref<6x1xf32, #tpu.memory_space<vmem>>, vector<6x1xf32>,
    %c0_i32_8 = arith.constant 0 : i32
    %12 = arith.cmpi eq, %arg1, %c0_i32_8 : i32
    %13 = arith.extui %12 : i1 to i32
    %c0_i32_9 = arith.constant 0 : i32
    %14 = arith.cmpi ne, %13, %c0_i32_9 : i32
    scf.if %14 {
      %c0_10 = arith.constant 0 : index
      %c0_11 = arith.constant 0 : index
      %15 = vector.load %arg5[%c0_10, %c0_11] : memref<6x1xf32, #tpu.memory_space<vmem>>, vector<6x1xf32>
      %16 = math.sqrt %15 : vector<6x1xf32>
      %c0_12 = arith.constant 0 : index
      %c0_13 = arith.constant 0 : index
      %17 = vector.load %arg4[%c0_12, %c0_13] : memref<6x1xf32, #tpu.memory_space<vmem>>, vector<6x1xf32>
      tpu.vector_store %arg4[%c0_12, %c0_13], %16 {strides = array<i32>} : memref<6x1xf32, #tpu.memory_space<vmem>>, vector<6x1xf32>,
    } else {
    }
    return
  }
  func.func @transform_0(%arg0: i32, %arg1: i32) -> (i32, i32) {
    %c0_i32 = arith.constant 0 : i32
    return %arg0, %arg1 : i32, i32
  }
  func.func @transform_1(%arg0: i32, %arg1: i32) -> (i32, i32) {
    %c0_i32 = arith.constant 0 : i32
    return %arg0, %arg1 : i32, i32
  }
  func.func @transform_2(%arg0: i32, %arg1: i32) -> (i32, i32) {
    %c0_i32 = arith.constant 0 : i32
    %c0_i32_0 = arith.constant 0 : i32
    return %arg0, %c0_i32 : i32, i32
  }
}

</mosaic_0001>

<llo_original>
// kernel: tpu_custom_call.1
$region0: #{tpu_custom_call.1}
  #allocation0 [shape = 'u32[]', space=smem, size = 0x4, offset = 0x4, fixed_abs, tag = 'smem constant byte address 0x4 - core index']
  #allocation1 [shape = 'u32[144,128]{1,0:T(1,128)}', space=vmem, size = 0x12000, scoped, tag = 'internal scratch']
  #allocation2 [shape = 'f32[6,1]{1,0:T(8,128)}', space=vmem, size = 0x1000, scoped, tag = 'scratch operand']
  %s0 = inlined_call_operand.hbm [shape: f32[6,160], index: 0, kind: input, shape index: {}]
  %s1 = inlined_call_operand.hbm [shape: f32[6,160], index: 1, kind: input, shape index: {}]
  %s2 = inlined_call_operand.vmem [shape: f32[6,1], index: 2, kind: output, shape index: {}]
  %s3 = sld [smem:[#allocation0]]
  $region34: #{tpu_custom_call.1} parent=0
    _
  %s5 = ssub.s32 1, %s3
  %s6 = scalar_select 0, %s5, %s3
  $region1: #{tpu_custom_call.1} parent=0
    #allocation3 [shape = 'u8[8192]{0}', space=vmem, size = 0x2000, scoped, tag = 'input window, operand 0, single buffered']
    #allocation4 [shape = 's32[1]{0}', space=sflag, size = 0x4, scoped, tag = 'scoped memory for tpu_custom_call.1']
    #allocation5 [shape = 'u8[8192]{0}', space=vmem, size = 0x2000, scoped, tag = 'input window, operand 1, single buffered']
    #allocation6 [shape = 's32[1]{0}', space=sflag, size = 0x4, scoped, tag = 'scoped memory for tpu_custom_call.1']
    %7 = vsyncpa [#allocation4], 0
    %8 = vsyncpa [#allocation6], 0
    // Predicated region
    $region2: #{tpu_custom_call.1} parent=1 // pred_check
      _
    $region3: #{tpu_custom_call.1} parent=1 // pred_check_branch
      %10 = sbr.rel (0) target = $region5
    $region4: #{tpu_custom_call.1} parent=1 // pred_region
      %s12 = ssub.s32 256, 256
      %13 = vsyncadd [#allocation4], %s12
      %s15 = sshll.u32 [#allocation3], 4
      %s16 = int_to_ptr.vmem [resolvable:$true] %s15
      %18 = dma.hbm_to_vmem [thread:$0]  %s0, 256, %s16, [#allocation4]
    $region5: #{tpu_custom_call.1} parent=1 // pred_fallthru
      _
    // Predicated region
    $region6: #{tpu_custom_call.1} parent=1 // pred_check
      _
    $region7: #{tpu_custom_call.1} parent=1 // pred_check_branch
      %20 = sbr.rel (0) target = $region9
    $region8: #{tpu_custom_call.1} parent=1 // pred_region
      %s22 = ssub.s32 256, 256
      %23 = vsyncadd [#allocation6], %s22
      %s25 = sshll.u32 [#allocation5], 4
      %s26 = int_to_ptr.vmem [resolvable:$true] %s25
      %28 = dma.hbm_to_vmem [thread:$0]  %s1, 256, %s26, [#allocation6]
    $region9: #{tpu_custom_call.1} parent=1 // pred_fallthru
      _
    // Predicated region
    $region10: #{tpu_custom_call.1} parent=1 // pred_check
      _
    $region11: #{tpu_custom_call.1} parent=1 // pred_check_branch
      %30 = sbr.rel (0) target = $region13
    $region12: #{tpu_custom_call.1} parent=1 // pred_region
      %31 = dma.done [#allocation4], 256
    $region13: #{tpu_custom_call.1} parent=1 // pred_fallthru
      _
    // Predicated region
    $region14: #{tpu_custom_call.1} parent=1 // pred_check
      _
    $region15: #{tpu_custom_call.1} parent=1 // pred_check_branch
      %33 = sbr.rel (0) target = $region17
    $region16: #{tpu_custom_call.1} parent=1 // pred_region
      %34 = dma.done [#allocation6], 256
    $region17: #{tpu_custom_call.1} parent=1 // pred_fallthru
      _
    %p35 = scmp.eq.s32.totalorder 0, 0
    // Predicated region
    $region18: #{tpu_custom_call.1} parent=1 // pred_check
      %p36 = pneg %p35
    $region19: #{tpu_custom_call.1} parent=1 // pred_check_branch
      %38 = sbr.rel (%p36) target = $region21
    $region20: #{tpu_custom_call.1} parent=1 // pred_region
      %vm39 = vcmask 5120
      %40 = vst.msk [vmem:[#allocation2] sm:$0x3f] %vm39, 0.0
    $region21: #{tpu_custom_call.1} parent=1 // pred_fallthru
      _
    %v41 = vld [vmem:[#allocation5] sm:$0x3f]
    %v42 = vld [vmem:[#allocation5 + $0x8] sm:$0x3f]
    %v43 = vld [vmem:[#allocation3] sm:$0x3f]
    %v44 = vld [vmem:[#allocation3 + $0x8] sm:$0x3f]
    %v45 = vsub.f32 %v41, %v43
    %v46 = vsub.f32 %v42, %v44
    %v47 = vld [vmem:[#allocation2] sm:$0x3f]
    %v48 = vmul.f32 %v45, %v45
    %v49 = vmul.f32 %v46, %v46
    %vm50 = vcmask 1045504
    %v51 = vsel %vm50, %v48, 0.0
    %vm52 = vcmask 259072
    %v53 = vsel %vm52, %v49, 0.0
    %v54 = vadd.f32 %v51, %v53
    %55 = vadd.xlane.f32.xlu0 %v54
    %v56 = vpop.xlane.xlu0 %55
    %v57 = vadd.f32 %v47, %v56
    %vm58 = vcmask 5120
    %59 = vst.msk [vmem:[#allocation2] sm:$0x3f] %vm58, %v57
    // Predicated region
    $region22: #{tpu_custom_call.1} parent=1 // pred_check
      %p60 = pneg %p35
    $region23: #{tpu_custom_call.1} parent=1 // pred_check_branch
      %62 = sbr.rel (%p60) target = $region25
    $region24: #{tpu_custom_call.1} parent=1 // pred_region
      %v63 = vld [vmem:[#allocation2] sm:$0x3f]
      %v64 = vrsqrt.pop %v63
      %v65 = vmul.f32 %v63, %v64
      %vm66 = vcmp.eq.f32.partialorder %v63, inf
      %v67 = vsel %vm66, %v63, %v65
      %vm68 = vcmp.eq.f32.partialorder %v63, 0.0
      %v69 = vand.u32 %v63, 2147483648
      %v70 = vsel %vm68, %v69, %v67
      %71 = vst.msk [vmem:[%s2] sm:$0x3f] %vm58, %v70
    $region25: #{tpu_custom_call.1} parent=1 // pred_fallthru
      _
    // Predicated region
    $region26: #{tpu_custom_call.1} parent=1 // pred_check
      _
    $region27: #{tpu_custom_call.1} parent=1 // pred_check_branch
      %73 = sbr.rel (0) target = $region29
    $region28: #{tpu_custom_call.1} parent=1 // pred_region
      _
    $region29: #{tpu_custom_call.1} parent=1 // pred_fallthru
      _
    // Predicated region
    $region30: #{tpu_custom_call.1} parent=1 // pred_check
      _
    $region31: #{tpu_custom_call.1} parent=1 // pred_check_branch
      %75 = sbr.rel (0) target = $region33
    $region32: #{tpu_custom_call.1} parent=1 // pred_region
      _
    $region33: #{tpu_custom_call.1} parent=1 // pred_fallthru
      _
    %76 = vsyncpa [#allocation4], 1
    %77 = vsyncpa [#allocation6], 1

</llo_original>
